<compile_context>
chip_gen: v5e
topology: v5e:2x2
jax: 0.10.0
libtpu: 0.0.40
codegen_flags: <defaults>
</compile_context>

<pallas_src>
import math

import jax
import jax.numpy as jnp
from jax import lax
from jax.experimental import pallas as pl
from jax.experimental.pallas import tpu as pltpu


# -----------------------------------------------------------------------------
# Pallas kernel: whole-sequence LSTM + mean decoder in one invocation.
# -----------------------------------------------------------------------------
def _lstm_decode_kernel(
    x_ref,        # (T*B, D_in)  flattened input sequence (wrapper reshapes)
    wih_ref,      # (D_in, 4H)   fused input->hidden weights (i|f|g|o)
    whh_ref,      # (H, 4H)      fused hidden->hidden weights (i|f|g|o)
    b_ref,        # (1, 4H)      fused bias (b_ih + b_hh)
    wdec_ref,     # (H, A)       mean decoder weight (transposed)
    bdec_ref,     # (1, A)       mean decoder bias
    h0_ref,       # (B, H)       initial hidden state
    c0_ref,       # (B, H)       initial cell state
    mean_ref,     # (T*B, A)     output: decoded means (wrapper reshapes back)
    h_out_ref,    # (B, H)       output: final hidden state
    c_out_ref,    # (B, H)       output: final cell state
    hh_sc,        # VMEM (T*B, H) hidden-state history for the batched decoder
):
    TB, _ = x_ref.shape
    B, H = h0_ref.shape
    T = TB // B

    # Per-lane gate scale: 0.5 on the i/f/o quarters, 1.0 on the g quarter.
    # With gates pre-scaled this way, one full-vreg tanh yields
    #   sigmoid(raw) = 0.5*tanh(0.5*raw) + 0.5   on the i/f/o quarters
    #   tanh(raw)                                on the g quarter.
    lane = lax.broadcasted_iota(jnp.int32, (1, 4 * H), 1)
    gate_scale = jnp.where((lane >= 2 * H) & (lane < 3 * H),
                           jnp.float32(1.0), jnp.float32(0.5))

    # Prologue: non-recurrent input projection for the whole sequence, bias
    # folded in, pre-scaled.  One bf16 (T*B, D_in) x (D_in, 4H) MXU matmul.
    # `gx` stays a live value (~8 vregs) — no VMEM round trip in the loop.
    gx = (
        jnp.dot(x_ref[...].astype(jnp.bfloat16),
                wih_ref[...].astype(jnp.bfloat16),
                preferred_element_type=jnp.float32)
        + b_ref[...]
    ) * gate_scale

    # Hoisted, pre-scaled, bf16 recurrent weights (scale is a power of 2, so
    # no extra precision loss beyond the bf16 cast).
    whh_b = (whh_ref[...] * gate_scale).astype(jnp.bfloat16)
    wdec_b = wdec_ref[...].astype(jnp.bfloat16)

    h = h0_ref[...]
    c = c0_ref[...]

    # Fully-unrolled static time loop: only h_prev @ Whh + the gate
    # nonlinearities sit on the serial critical path.  Elementwise math and
    # the h/c carries stay f32 (only the MXU operands are bf16).
    for t in range(T):
        gates = gx[t * B:(t + 1) * B, :] + jnp.dot(
            h.astype(jnp.bfloat16), whh_b, preferred_element_type=jnp.float32)
        tg = jnp.tanh(gates)            # single full-(8,128)-vreg EUP push
        sg = 0.5 * tg + 0.5             # sigmoid for the i/f/o quarters
        # PyTorch LSTM gate order: input, forget, cell (g), output.
        i_g = sg[:, 0 * H:1 * H]
        f_g = sg[:, 1 * H:2 * H]
        g_g = tg[:, 2 * H:3 * H]
        o_g = sg[:, 3 * H:4 * H]
        c = f_g * c + i_g * g_g
        h = o_g * jnp.tanh(c)
        # Off the critical path: never read back inside the loop.
        hh_sc[pl.ds(t * B, B), :] = h

    # Epilogue: batched mean decoder — one bf16 (T*B, H) x (H, A) matmul and
    # a single contiguous store.
    mean = (
        jnp.dot(hh_sc[...].astype(jnp.bfloat16), wdec_b,
                preferred_element_type=jnp.float32)
        + bdec_ref[...]
    )
    mean_ref[...] = mean.astype(mean_ref.dtype)

    # Final states written exactly once.
    h_out_ref[...] = h.astype(h_out_ref.dtype)
    c_out_ref[...] = c.astype(c_out_ref.dtype)


def lstm_mean_pallas(x, wih, whh, b, wdec, bdec, h0, c0):
    """Run the LSTM + mean decoder over the full sequence.

    x: (T, B, D_in) float32; fused weights as documented in the kernel.
    Returns: mean (T, B, A), h_n (B, H), c_n (B, H)
    """
    T, B, D_in = x.shape
    H = whh.shape[0]
    H4 = whh.shape[1]
    A = wdec.shape[-1]
    TB = T * B

    # Wrapper-side reshape: the kernel only sees 2-D, sublane-aligned slabs.
    x2d = x.reshape(TB, D_in)

    grid_spec = pltpu.PrefetchScalarGridSpec(
        num_scalar_prefetch=0,
        grid=(1,),  # single invocation; time loop lives inside the kernel
        in_specs=[
            pl.BlockSpec((TB, D_in), lambda i: (0, 0)),   # x (flattened)
            pl.BlockSpec((D_in, H4), lambda i: (0, 0)),   # wih fused
            pl.BlockSpec((H, H4), lambda i: (0, 0)),      # whh fused
            pl.BlockSpec((1, H4), lambda i: (0, 0)),      # bias fused
            pl.BlockSpec((H, A), lambda i: (0, 0)),       # wdec
            pl.BlockSpec((1, A), lambda i: (0, 0)),       # bdec
            pl.BlockSpec((B, H), lambda i: (0, 0)),       # h0
            pl.BlockSpec((B, H), lambda i: (0, 0)),       # c0
        ],
        out_specs=[
            pl.BlockSpec((TB, A), lambda i: (0, 0)),      # mean (flattened)
            pl.BlockSpec((B, H), lambda i: (0, 0)),       # h_n
            pl.BlockSpec((B, H), lambda i: (0, 0)),       # c_n
        ],
        scratch_shapes=[
            pltpu.VMEM((TB, H), jnp.float32),  # hidden history for decoder
        ],
    )

    out_shape = (
        jax.ShapeDtypeStruct((TB, A), jnp.float32),
        jax.ShapeDtypeStruct((B, H), jnp.float32),
        jax.ShapeDtypeStruct((B, H), jnp.float32),
    )

    mean2d, h_n, c_n = pl.pallas_call(
        _lstm_decode_kernel,
        grid_spec=grid_spec,
        out_shape=out_shape,
        compiler_params=pltpu.CompilerParams(
            dimension_semantics=("arbitrary",),
        ),
    )(x2d, wih, whh, b, wdec, bdec, h0, c0)

    return mean2d.reshape(T, B, A), h_n, c_n


# -----------------------------------------------------------------------------
# Module-level wrapper (parameters + std computation = glue in plain JAX).
# -----------------------------------------------------------------------------
def init_params(key, input_dim, hidden_dim, output_dim, init_std=1.0):
    """Deterministic parameter init (PyTorch-LSTM-style uniform), fused gates."""
    ks = jax.random.split(key, 6)
    bound = 1.0 / math.sqrt(hidden_dim)
    # Fused per-gate weights, gate order (i, f, g, o) along the last axis,
    # stored pre-transposed so the kernel computes x @ W directly.
    wih = jax.random.uniform(
        ks[0], (input_dim, 4 * hidden_dim), jnp.float32, -bound, bound)
    whh = jax.random.uniform(
        ks[1], (hidden_dim, 4 * hidden_dim), jnp.float32, -bound, bound)
    b_ih = jax.random.uniform(
        ks[2], (1, 4 * hidden_dim), jnp.float32, -bound, bound)
    b_hh = jax.random.uniform(
        ks[3], (1, 4 * hidden_dim), jnp.float32, -bound, bound)
    b = b_ih + b_hh
    # mean_decoder: nn.Linear(hidden_dim, output_dim), xavier-uniform weight.
    dbound = math.sqrt(6.0 / (hidden_dim + output_dim))
    wdec = jax.random.uniform(
        ks[4], (hidden_dim, output_dim), jnp.float32, -dbound, dbound)
    bdec = jnp.zeros((1, output_dim), jnp.float32)
    # init_std parameter (learnable log-std per action dim; share_std=False).
    log_std = jnp.full((output_dim,), math.log(init_std), jnp.float32)
    return dict(wih=wih, whh=whh, b=b, wdec=wdec, bdec=bdec, log_std=log_std)


def gaussian_lstm_forward(params, inputs, prev_hidden_state=None,
                          prev_cell_state=None, min_std=1e-6, max_std=None,
                          std_parameterization="exp"):
    """Mirrors GaussianLSTMModule.forward (share_std=False defaults)."""
    T, B, D_in = inputs.shape
    H = params["whh"].shape[0]

    if prev_hidden_state is None:
        h0 = jnp.zeros((B, H), jnp.float32)
    else:
        h0 = prev_hidden_state.reshape(B, H)
    if prev_cell_state is None:
        c0 = jnp.zeros((B, H), jnp.float32)
    else:
        c0 = prev_cell_state.reshape(B, H)

    mean, h_n, c_n = lstm_mean_pallas(
        inputs, params["wih"], params["whh"], params["b"],
        params["wdec"], params["bdec"], h0, c0)

    # std path (tiny, elementwise on a length-A vector -> plain JAX glue).
    log_std_uncentered = params["log_std"]
    lo = math.log(min_std) if min_std is not None else -jnp.inf
    hi = math.log(max_std) if max_std is not None else jnp.inf
    log_std_uncentered = jnp.clip(log_std_uncentered, lo, hi)
    if std_parameterization == "exp":
        std = jnp.diag(jnp.exp(log_std_uncentered))
    else:
        # Module computes log(1 + exp(exp(x))); use the numerically-stable
        # softplus form (same math, no f32 overflow for large x).
        std = jnp.diag(jax.nn.softplus(jnp.exp(log_std_uncentered)))

    # torch returns (num_layers, B, H) for the LSTM states.
    return mean, std, h_n[None, :, :], c_n[None, :, :]


# -----------------------------------------------------------------------------
# Pure-JAX reference (for a sanity check of the Pallas kernel).
# -----------------------------------------------------------------------------
def _reference_forward(params, inputs, h0, c0):
    wih, whh, b = params["wih"], params["whh"], params["b"]
    wdec, bdec = params["wdec"], params["bdec"]
    H = whh.shape[0]

    def step(carry, x_t):
        h, c = carry
        gates = x_t @ wih + h @ whh + b
        i = jax.nn.sigmoid(gates[:, 0 * H:1 * H])
        f = jax.nn.sigmoid(gates[:, 1 * H:2 * H])
        g = jnp.tanh(gates[:, 2 * H:3 * H])
        o = jax.nn.sigmoid(gates[:, 3 * H:4 * H])
        c_new = f * c + i * g
        h_new = o * jnp.tanh(c_new)
        mean_t = h_new @ wdec + bdec
        return (h_new, c_new), mean_t

    (h_n, c_n), means = lax.scan(step, (h0, c0), inputs)
    return means, h_n, c_n


if __name__ == "__main__":
    # Small shapes consistent with the module:
    T, B = 8, 8                 # seq len, batch
    input_dim, hidden_dim, output_dim = 16, 32, 8

    key = jax.random.PRNGKey(0)
    pkey, xkey = jax.random.split(key)
    params = init_params(pkey, input_dim, hidden_dim, output_dim, init_std=1.0)
    x = jax.random.normal(xkey, (T, B, input_dim), jnp.float32)

    mean, std, h_n, c_n = gaussian_lstm_forward(params, x)
    jax.block_until_ready((mean, std, h_n, c_n))

    # Sanity check against a pure-JAX f32 reference (bf16 MXU operands in the
    # kernel introduce a small, bounded drift -> 2e-2 tolerance).
    h0 = jnp.zeros((B, hidden_dim), jnp.float32)
    c0 = jnp.zeros((B, hidden_dim), jnp.float32)
    ref_mean, ref_h, ref_c = _reference_forward(params, x, h0, c0)

    assert mean.shape == (T, B, output_dim)
    assert std.shape == (output_dim, output_dim)
    assert h_n.shape == (1, B, hidden_dim)
    assert c_n.shape == (1, B, hidden_dim)
    assert jnp.allclose(mean, ref_mean, atol=2e-2, rtol=2e-2)
    assert jnp.allclose(h_n[0], ref_h, atol=2e-2, rtol=2e-2)
    assert jnp.allclose(c_n[0], ref_c, atol=2e-2, rtol=2e-2)
    # With defaults (init_std=1.0, exp parameterization): std == identity.
    assert jnp.allclose(std, jnp.eye(output_dim), atol=1e-6)

    print("KERNEL_OK")
</pallas_src>

<mosaic_0001>
module attributes {stable_mosaic.version = 11 : i64} {
  func.func @_lstm_decode_kernel(%arg0: i32, %arg1: memref<64x16xf32, #tpu.memory_space<vmem>>, %arg2: memref<16x128xf32, #tpu.memory_space<vmem>>, %arg3: memref<32x128xf32, #tpu.memory_space<vmem>>, %arg4: memref<1x128xf32, #tpu.memory_space<vmem>>, %arg5: memref<32x8xf32, #tpu.memory_space<vmem>>, %arg6: memref<1x8xf32, #tpu.memory_space<vmem>>, %arg7: memref<8x32xf32, #tpu.memory_space<vmem>>, %arg8: memref<8x32xf32, #tpu.memory_space<vmem>>, %arg9: memref<64x8xf32, #tpu.memory_space<vmem>>, %arg10: memref<8x32xf32, #tpu.memory_space<vmem>>, %arg11: memref<8x32xf32, #tpu.memory_space<vmem>>, %arg12: memref<64x32xf32, #tpu.memory_space<vmem>>) attributes {dimension_semantics = [#tpu.dimension_semantics<arbitrary>], iteration_bounds = array<i64: 1>, scalar_prefetch = 0 : i64, scratch_operands = 1 : i64, tpu.core_type = #tpu.core_type<tc>, window_params = [{pipeline_mode = #tpu.pipeline_mode<synchronous>, transform_indices = @transform_0, window_bounds = array<i64: 64, 16>}, {pipeline_mode = #tpu.pipeline_mode<synchronous>, transform_indices = @transform_1, window_bounds = array<i64: 16, 128>}, {pipeline_mode = #tpu.pipeline_mode<synchronous>, transform_indices = @transform_2, window_bounds = array<i64: 32, 128>}, {pipeline_mode = #tpu.pipeline_mode<synchronous>, transform_indices = @transform_3, window_bounds = array<i64: 1, 128>}, {pipeline_mode = #tpu.pipeline_mode<synchronous>, transform_indices = @transform_4, window_bounds = array<i64: 32, 8>}, {pipeline_mode = #tpu.pipeline_mode<synchronous>, transform_indices = @transform_5, window_bounds = array<i64: 1, 8>}, {pipeline_mode = #tpu.pipeline_mode<synchronous>, transform_indices = @transform_6, window_bounds = array<i64: 8, 32>}, {pipeline_mode = #tpu.pipeline_mode<synchronous>, transform_indices = @transform_7, window_bounds = array<i64: 8, 32>}, {pipeline_mode = #tpu.pipeline_mode<synchronous>, transform_indices = @transform_8, window_bounds = array<i64: 64, 8>}, {pipeline_mode = #tpu.pipeline_mode<synchronous>, transform_indices = @transform_9, window_bounds = array<i64: 8, 32>}, {pipeline_mode = #tpu.pipeline_mode<synchronous>, transform_indices = @transform_10, window_bounds = array<i64: 8, 32>}]} {
    %0 = tpu.iota {dimensions = array<i32: 1>} : vector<1x128xi32>
    %c64_i32 = arith.constant 64 : i32
    %1 = vector.broadcast %c64_i32 : i32 to vector<1x128xi32>
    %2 = arith.cmpi sge, %0, %1 : vector<1x128xi32>
    %c96_i32 = arith.constant 96 : i32
    %3 = vector.broadcast %c96_i32 : i32 to vector<1x128xi32>
    %4 = arith.cmpi slt, %0, %3 : vector<1x128xi32>
    %5 = arith.andi %2, %4 : vector<1x128xi1>
    %cst = arith.constant 1.000000e+00 : f32
    %cst_0 = arith.constant 5.000000e-01 : f32
    %6 = vector.broadcast %cst : f32 to vector<1x128xf32>
    %7 = vector.broadcast %cst_0 : f32 to vector<1x128xf32>
    %8 = arith.select %5, %6, %7 : vector<1x128xi1>, vector<1x128xf32>
    %c0 = arith.constant 0 : index
    %c0_1 = arith.constant 0 : index
    %9 = vector.load %arg1[%c0, %c0_1] : memref<64x16xf32, #tpu.memory_space<vmem>>, vector<64x16xf32>
    %10 = arith.truncf %9 : vector<64x16xf32> to vector<64x16xbf16>
    %c0_2 = arith.constant 0 : index
    %c0_3 = arith.constant 0 : index
    %11 = vector.load %arg2[%c0_2, %c0_3] : memref<16x128xf32, #tpu.memory_space<vmem>>, vector<16x128xf32>
    %12 = arith.truncf %11 : vector<16x128xf32> to vector<16x128xbf16>
    %cst_4 = arith.constant dense<0.000000e+00> : vector<64x128xf32>
    %13 = tpu.matmul %10, %12, %cst_4 {dimension_numbers = #tpu.dot_dimension_numbers<[1], [0], [0], [1], [0, 0, 1, 1], [], []>} : vector<64x16xbf16>, vector<16x128xbf16>, vector<64x128xf32> -> vector<64x128xf32>
    %c0_5 = arith.constant 0 : index
    %c0_6 = arith.constant 0 : index
    %14 = vector.load %arg4[%c0_5, %c0_6] : memref<1x128xf32, #tpu.memory_space<vmem>>, vector<1x128xf32>
    %15 = vector.broadcast %14 : vector<1x128xf32> to vector<64x128xf32>
    %16 = arith.addf %13, %15 : vector<64x128xf32>
    %17 = vector.broadcast %8 : vector<1x128xf32> to vector<64x128xf32>
    %18 = arith.mulf %16, %17 : vector<64x128xf32>
    %c0_7 = arith.constant 0 : index
    %c0_8 = arith.constant 0 : index
    %19 = vector.load %arg3[%c0_7, %c0_8] : memref<32x128xf32, #tpu.memory_space<vmem>>, vector<32x128xf32>
    %20 = vector.broadcast %8 : vector<1x128xf32> to vector<32x128xf32>
    %21 = arith.mulf %19, %20 : vector<32x128xf32>
    %22 = arith.truncf %21 : vector<32x128xf32> to vector<32x128xbf16>
    %c0_9 = arith.constant 0 : index
    %c0_10 = arith.constant 0 : index
    %23 = vector.load %arg5[%c0_9, %c0_10] : memref<32x8xf32, #tpu.memory_space<vmem>>, vector<32x8xf32>
    %24 = arith.truncf %23 : vector<32x8xf32> to vector<32x8xbf16>
    %c0_11 = arith.constant 0 : index
    %c0_12 = arith.constant 0 : index
    %25 = vector.load %arg7[%c0_11, %c0_12] : memref<8x32xf32, #tpu.memory_space<vmem>>, vector<8x32xf32>
    %c0_13 = arith.constant 0 : index
    %c0_14 = arith.constant 0 : index
    %26 = vector.load %arg8[%c0_13, %c0_14] : memref<8x32xf32, #tpu.memory_space<vmem>>, vector<8x32xf32>
    %27 = vector.extract_strided_slice %18 {offsets = [0, 0], sizes = [8, 128], strides = [1, 1]} : vector<64x128xf32> to vector<8x128xf32>
    %28 = arith.truncf %25 : vector<8x32xf32> to vector<8x32xbf16>
    %cst_15 = arith.constant dense<0.000000e+00> : vector<8x128xf32>
    %29 = tpu.matmul %28, %22, %cst_15 {dimension_numbers = #tpu.dot_dimension_numbers<[1], [0], [0], [1], [0, 0, 1, 1], [], []>} : vector<8x32xbf16>, vector<32x128xbf16>, vector<8x128xf32> -> vector<8x128xf32>
    %30 = arith.addf %27, %29 : vector<8x128xf32>
    %31 = math.tanh %30 : vector<8x128xf32>
    %cst_16 = arith.constant 5.000000e-01 : f32
    %32 = vector.broadcast %cst_16 : f32 to vector<8x128xf32>
    %33 = arith.mulf %32, %31 : vector<8x128xf32>
    %cst_17 = arith.constant 5.000000e-01 : f32
    %34 = vector.broadcast %cst_17 : f32 to vector<8x128xf32>
    %35 = arith.addf %33, %34 : vector<8x128xf32>
    %36 = vector.extract_strided_slice %35 {offsets = [0, 0], sizes = [8, 32], strides = [1, 1]} : vector<8x128xf32> to vector<8x32xf32>
    %37 = vector.extract_strided_slice %35 {offsets = [0, 32], sizes = [8, 32], strides = [1, 1]} : vector<8x128xf32> to vector<8x32xf32>
    %38 = vector.extract_strided_slice %31 {offsets = [0, 64], sizes = [8, 32], strides = [1, 1]} : vector<8x128xf32> to vector<8x32xf32>
    %39 = vector.extract_strided_slice %35 {offsets = [0, 96], sizes = [8, 32], strides = [1, 1]} : vector<8x128xf32> to vector<8x32xf32>
    %40 = arith.mulf %37, %26 : vector<8x32xf32>
    %41 = arith.mulf %36, %38 : vector<8x32xf32>
    %42 = arith.addf %40, %41 : vector<8x32xf32>
    %43 = math.tanh %42 : vector<8x32xf32>
    %44 = arith.mulf %39, %43 : vector<8x32xf32>
    %c0_18 = arith.constant 0 : index
    %c0_19 = arith.constant 0 : index
    %45 = vector.load %arg12[%c0_18, %c0_19] : memref<64x32xf32, #tpu.memory_space<vmem>>, vector<8x32xf32>
    tpu.vector_store %arg12[%c0_18, %c0_19], %44 {strides = array<i32>} : memref<64x32xf32, #tpu.memory_space<vmem>>, vector<8x32xf32>,
    %46 = vector.extract_strided_slice %18 {offsets = [8, 0], sizes = [8, 128], strides = [1, 1]} : vector<64x128xf32> to vector<8x128xf32>
    %47 = arith.truncf %44 : vector<8x32xf32> to vector<8x32xbf16>
    %cst_20 = arith.constant dense<0.000000e+00> : vector<8x128xf32>
    %48 = tpu.matmul %47, %22, %cst_20 {dimension_numbers = #tpu.dot_dimension_numbers<[1], [0], [0], [1], [0, 0, 1, 1], [], []>} : vector<8x32xbf16>, vector<32x128xbf16>, vector<8x128xf32> -> vector<8x128xf32>
    %49 = arith.addf %46, %48 : vector<8x128xf32>
    %50 = math.tanh %49 : vector<8x128xf32>
    %cst_21 = arith.constant 5.000000e-01 : f32
    %51 = vector.broadcast %cst_21 : f32 to vector<8x128xf32>
    %52 = arith.mulf %51, %50 : vector<8x128xf32>
    %cst_22 = arith.constant 5.000000e-01 : f32
    %53 = vector.broadcast %cst_22 : f32 to vector<8x128xf32>
    %54 = arith.addf %52, %53 : vector<8x128xf32>
    %55 = vector.extract_strided_slice %54 {offsets = [0, 0], sizes = [8, 32], strides = [1, 1]} : vector<8x128xf32> to vector<8x32xf32>
    %56 = vector.extract_strided_slice %54 {offsets = [0, 32], sizes = [8, 32], strides = [1, 1]} : vector<8x128xf32> to vector<8x32xf32>
    %57 = vector.extract_strided_slice %50 {offsets = [0, 64], sizes = [8, 32], strides = [1, 1]} : vector<8x128xf32> to vector<8x32xf32>
    %58 = vector.extract_strided_slice %54 {offsets = [0, 96], sizes = [8, 32], strides = [1, 1]} : vector<8x128xf32> to vector<8x32xf32>
    %59 = arith.mulf %56, %42 : vector<8x32xf32>
    %60 = arith.mulf %55, %57 : vector<8x32xf32>
    %61 = arith.addf %59, %60 : vector<8x32xf32>
    %62 = math.tanh %61 : vector<8x32xf32>
    %63 = arith.mulf %58, %62 : vector<8x32xf32>
    %c8 = arith.constant 8 : index
    %c0_23 = arith.constant 0 : index
    %64 = vector.load %arg12[%c8, %c0_23] : memref<64x32xf32, #tpu.memory_space<vmem>>, vector<8x32xf32>
    tpu.vector_store %arg12[%c8, %c0_23], %63 {strides = array<i32>} : memref<64x32xf32, #tpu.memory_space<vmem>>, vector<8x32xf32>,
    %65 = vector.extract_strided_slice %18 {offsets = [16, 0], sizes = [8, 128], strides = [1, 1]} : vector<64x128xf32> to vector<8x128xf32>
    %66 = arith.truncf %63 : vector<8x32xf32> to vector<8x32xbf16>
    %cst_24 = arith.constant dense<0.000000e+00> : vector<8x128xf32>
    %67 = tpu.matmul %66, %22, %cst_24 {dimension_numbers = #tpu.dot_dimension_numbers<[1], [0], [0], [1], [0, 0, 1, 1], [], []>} : vector<8x32xbf16>, vector<32x128xbf16>, vector<8x128xf32> -> vector<8x128xf32>
    %68 = arith.addf %65, %67 : vector<8x128xf32>
    %69 = math.tanh %68 : vector<8x128xf32>
    %cst_25 = arith.constant 5.000000e-01 : f32
    %70 = vector.broadcast %cst_25 : f32 to vector<8x128xf32>
    %71 = arith.mulf %70, %69 : vector<8x128xf32>
    %cst_26 = arith.constant 5.000000e-01 : f32
    %72 = vector.broadcast %cst_26 : f32 to vector<8x128xf32>
    %73 = arith.addf %71, %72 : vector<8x128xf32>
    %74 = vector.extract_strided_slice %73 {offsets = [0, 0], sizes = [8, 32], strides = [1, 1]} : vector<8x128xf32> to vector<8x32xf32>
    %75 = vector.extract_strided_slice %73 {offsets = [0, 32], sizes = [8, 32], strides = [1, 1]} : vector<8x128xf32> to vector<8x32xf32>
    %76 = vector.extract_strided_slice %69 {offsets = [0, 64], sizes = [8, 32], strides = [1, 1]} : vector<8x128xf32> to vector<8x32xf32>
    %77 = vector.extract_strided_slice %73 {offsets = [0, 96], sizes = [8, 32], strides = [1, 1]} : vector<8x128xf32> to vector<8x32xf32>
    %78 = arith.mulf %75, %61 : vector<8x32xf32>
    %79 = arith.mulf %74, %76 : vector<8x32xf32>
    %80 = arith.addf %78, %79 : vector<8x32xf32>
    %81 = math.tanh %80 : vector<8x32xf32>
    %82 = arith.mulf %77, %81 : vector<8x32xf32>
    %c16 = arith.constant 16 : index
    %c0_27 = arith.constant 0 : index
    %83 = vector.load %arg12[%c16, %c0_27] : memref<64x32xf32, #tpu.memory_space<vmem>>, vector<8x32xf32>
    tpu.vector_store %arg12[%c16, %c0_27], %82 {strides = array<i32>} : memref<64x32xf32, #tpu.memory_space<vmem>>, vector<8x32xf32>,
    %84 = vector.extract_strided_slice %18 {offsets = [24, 0], sizes = [8, 128], strides = [1, 1]} : vector<64x128xf32> to vector<8x128xf32>
    %85 = arith.truncf %82 : vector<8x32xf32> to vector<8x32xbf16>
    %cst_28 = arith.constant dense<0.000000e+00> : vector<8x128xf32>
    %86 = tpu.matmul %85, %22, %cst_28 {dimension_numbers = #tpu.dot_dimension_numbers<[1], [0], [0], [1], [0, 0, 1, 1], [], []>} : vector<8x32xbf16>, vector<32x128xbf16>, vector<8x128xf32> -> vector<8x128xf32>
    %87 = arith.addf %84, %86 : vector<8x128xf32>
    %88 = math.tanh %87 : vector<8x128xf32>
    %cst_29 = arith.constant 5.000000e-01 : f32
    %89 = vector.broadcast %cst_29 : f32 to vector<8x128xf32>
    %90 = arith.mulf %89, %88 : vector<8x128xf32>
    %cst_30 = arith.constant 5.000000e-01 : f32
    %91 = vector.broadcast %cst_30 : f32 to vector<8x128xf32>
    %92 = arith.addf %90, %91 : vector<8x128xf32>
    %93 = vector.extract_strided_slice %92 {offsets = [0, 0], sizes = [8, 32], strides = [1, 1]} : vector<8x128xf32> to vector<8x32xf32>
    %94 = vector.extract_strided_slice %92 {offsets = [0, 32], sizes = [8, 32], strides = [1, 1]} : vector<8x128xf32> to vector<8x32xf32>
    %95 = vector.extract_strided_slice %88 {offsets = [0, 64], sizes = [8, 32], strides = [1, 1]} : vector<8x128xf32> to vector<8x32xf32>
    %96 = vector.extract_strided_slice %92 {offsets = [0, 96], sizes = [8, 32], strides = [1, 1]} : vector<8x128xf32> to vector<8x32xf32>
    %97 = arith.mulf %94, %80 : vector<8x32xf32>
    %98 = arith.mulf %93, %95 : vector<8x32xf32>
    %99 = arith.addf %97, %98 : vector<8x32xf32>
    %100 = math.tanh %99 : vector<8x32xf32>
    %101 = arith.mulf %96, %100 : vector<8x32xf32>
    %c24 = arith.constant 24 : index
    %c0_31 = arith.constant 0 : index
    %102 = vector.load %arg12[%c24, %c0_31] : memref<64x32xf32, #tpu.memory_space<vmem>>, vector<8x32xf32>
    tpu.vector_store %arg12[%c24, %c0_31], %101 {strides = array<i32>} : memref<64x32xf32, #tpu.memory_space<vmem>>, vector<8x32xf32>,
    %103 = vector.extract_strided_slice %18 {offsets = [32, 0], sizes = [8, 128], strides = [1, 1]} : vector<64x128xf32> to vector<8x128xf32>
    %104 = arith.truncf %101 : vector<8x32xf32> to vector<8x32xbf16>
    %cst_32 = arith.constant dense<0.000000e+00> : vector<8x128xf32>
    %105 = tpu.matmul %104, %22, %cst_32 {dimension_numbers = #tpu.dot_dimension_numbers<[1], [0], [0], [1], [0, 0, 1, 1], [], []>} : vector<8x32xbf16>, vector<32x128xbf16>, vector<8x128xf32> -> vector<8x128xf32>
    %106 = arith.addf %103, %105 : vector<8x128xf32>
    %107 = math.tanh %106 : vector<8x128xf32>
    %cst_33 = arith.constant 5.000000e-01 : f32
    %108 = vector.broadcast %cst_33 : f32 to vector<8x128xf32>
    %109 = arith.mulf %108, %107 : vector<8x128xf32>
    %cst_34 = arith.constant 5.000000e-01 : f32
    %110 = vector.broadcast %cst_34 : f32 to vector<8x128xf32>
    %111 = arith.addf %109, %110 : vector<8x128xf32>
    %112 = vector.extract_strided_slice %111 {offsets = [0, 0], sizes = [8, 32], strides = [1, 1]} : vector<8x128xf32> to vector<8x32xf32>
    %113 = vector.extract_strided_slice %111 {offsets = [0, 32], sizes = [8, 32], strides = [1, 1]} : vector<8x128xf32> to vector<8x32xf32>
    %114 = vector.extract_strided_slice %107 {offsets = [0, 64], sizes = [8, 32], strides = [1, 1]} : vector<8x128xf32> to vector<8x32xf32>
    %115 = vector.extract_strided_slice %111 {offsets = [0, 96], sizes = [8, 32], strides = [1, 1]} : vector<8x128xf32> to vector<8x32xf32>
    %116 = arith.mulf %113, %99 : vector<8x32xf32>
    %117 = arith.mulf %112, %114 : vector<8x32xf32>
    %118 = arith.addf %116, %117 : vector<8x32xf32>
    %119 = math.tanh %118 : vector<8x32xf32>
    %120 = arith.mulf %115, %119 : vector<8x32xf32>
    %c32 = arith.constant 32 : index
    %c0_35 = arith.constant 0 : index
    %121 = vector.load %arg12[%c32, %c0_35] : memref<64x32xf32, #tpu.memory_space<vmem>>, vector<8x32xf32>
    tpu.vector_store %arg12[%c32, %c0_35], %120 {strides = array<i32>} : memref<64x32xf32, #tpu.memory_space<vmem>>, vector<8x32xf32>,
    %122 = vector.extract_strided_slice %18 {offsets = [40, 0], sizes = [8, 128], strides = [1, 1]} : vector<64x128xf32> to vector<8x128xf32>
    %123 = arith.truncf %120 : vector<8x32xf32> to vector<8x32xbf16>
    %cst_36 = arith.constant dense<0.000000e+00> : vector<8x128xf32>
    %124 = tpu.matmul %123, %22, %cst_36 {dimension_numbers = #tpu.dot_dimension_numbers<[1], [0], [0], [1], [0, 0, 1, 1], [], []>} : vector<8x32xbf16>, vector<32x128xbf16>, vector<8x128xf32> -> vector<8x128xf32>
    %125 = arith.addf %122, %124 : vector<8x128xf32>
    %126 = math.tanh %125 : vector<8x128xf32>
    %cst_37 = arith.constant 5.000000e-01 : f32
    %127 = vector.broadcast %cst_37 : f32 to vector<8x128xf32>
    %128 = arith.mulf %127, %126 : vector<8x128xf32>
    %cst_38 = arith.constant 5.000000e-01 : f32
    %129 = vector.broadcast %cst_38 : f32 to vector<8x128xf32>
    %130 = arith.addf %128, %129 : vector<8x128xf32>
    %131 = vector.extract_strided_slice %130 {offsets = [0, 0], sizes = [8, 32], strides = [1, 1]} : vector<8x128xf32> to vector<8x32xf32>
    %132 = vector.extract_strided_slice %130 {offsets = [0, 32], sizes = [8, 32], strides = [1, 1]} : vector<8x128xf32> to vector<8x32xf32>
    %133 = vector.extract_strided_slice %126 {offsets = [0, 64], sizes = [8, 32], strides = [1, 1]} : vector<8x128xf32> to vector<8x32xf32>
    %134 = vector.extract_strided_slice %130 {offsets = [0, 96], sizes = [8, 32], strides = [1, 1]} : vector<8x128xf32> to vector<8x32xf32>
    %135 = arith.mulf %132, %118 : vector<8x32xf32>
    %136 = arith.mulf %131, %133 : vector<8x32xf32>
    %137 = arith.addf %135, %136 : vector<8x32xf32>
    %138 = math.tanh %137 : vector<8x32xf32>
    %139 = arith.mulf %134, %138 : vector<8x32xf32>
    %c40 = arith.constant 40 : index
    %c0_39 = arith.constant 0 : index
    %140 = vector.load %arg12[%c40, %c0_39] : memref<64x32xf32, #tpu.memory_space<vmem>>, vector<8x32xf32>
    tpu.vector_store %arg12[%c40, %c0_39], %139 {strides = array<i32>} : memref<64x32xf32, #tpu.memory_space<vmem>>, vector<8x32xf32>,
    %141 = vector.extract_strided_slice %18 {offsets = [48, 0], sizes = [8, 128], strides = [1, 1]} : vector<64x128xf32> to vector<8x128xf32>
    %142 = arith.truncf %139 : vector<8x32xf32> to vector<8x32xbf16>
    %cst_40 = arith.constant dense<0.000000e+00> : vector<8x128xf32>
    %143 = tpu.matmul %142, %22, %cst_40 {dimension_numbers = #tpu.dot_dimension_numbers<[1], [0], [0], [1], [0, 0, 1, 1], [], []>} : vector<8x32xbf16>, vector<32x128xbf16>, vector<8x128xf32> -> vector<8x128xf32>
    %144 = arith.addf %141, %143 : vector<8x128xf32>
    %145 = math.tanh %144 : vector<8x128xf32>
    %cst_41 = arith.constant 5.000000e-01 : f32
    %146 = vector.broadcast %cst_41 : f32 to vector<8x128xf32>
    %147 = arith.mulf %146, %145 : vector<8x128xf32>
    %cst_42 = arith.constant 5.000000e-01 : f32
    %148 = vector.broadcast %cst_42 : f32 to vector<8x128xf32>
    %149 = arith.addf %147, %148 : vector<8x128xf32>
    %150 = vector.extract_strided_slice %149 {offsets = [0, 0], sizes = [8, 32], strides = [1, 1]} : vector<8x128xf32> to vector<8x32xf32>
    %151 = vector.extract_strided_slice %149 {offsets = [0, 32], sizes = [8, 32], strides = [1, 1]} : vector<8x128xf32> to vector<8x32xf32>
    %152 = vector.extract_strided_slice %145 {offsets = [0, 64], sizes = [8, 32], strides = [1, 1]} : vector<8x128xf32> to vector<8x32xf32>
    %153 = vector.extract_strided_slice %149 {offsets = [0, 96], sizes = [8, 32], strides = [1, 1]} : vector<8x128xf32> to vector<8x32xf32>
    %154 = arith.mulf %151, %137 : vector<8x32xf32>
    %155 = arith.mulf %150, %152 : vector<8x32xf32>
    %156 = arith.addf %154, %155 : vector<8x32xf32>
    %157 = math.tanh %156 : vector<8x32xf32>
    %158 = arith.mulf %153, %157 : vector<8x32xf32>
    %c48 = arith.constant 48 : index
    %c0_43 = arith.constant 0 : index
    %159 = vector.load %arg12[%c48, %c0_43] : memref<64x32xf32, #tpu.memory_space<vmem>>, vector<8x32xf32>
    tpu.vector_store %arg12[%c48, %c0_43], %158 {strides = array<i32>} : memref<64x32xf32, #tpu.memory_space<vmem>>, vector<8x32xf32>,
    %160 = vector.extract_strided_slice %18 {offsets = [56, 0], sizes = [8, 128], strides = [1, 1]} : vector<64x128xf32> to vector<8x128xf32>
    %161 = arith.truncf %158 : vector<8x32xf32> to vector<8x32xbf16>
    %cst_44 = arith.constant dense<0.000000e+00> : vector<8x128xf32>
    %162 = tpu.matmul %161, %22, %cst_44 {dimension_numbers = #tpu.dot_dimension_numbers<[1], [0], [0], [1], [0, 0, 1, 1], [], []>} : vector<8x32xbf16>, vector<32x128xbf16>, vector<8x128xf32> -> vector<8x128xf32>
    %163 = arith.addf %160, %162 : vector<8x128xf32>
    %164 = math.tanh %163 : vector<8x128xf32>
    %cst_45 = arith.constant 5.000000e-01 : f32
    %165 = vector.broadcast %cst_45 : f32 to vector<8x128xf32>
    %166 = arith.mulf %165, %164 : vector<8x128xf32>
    %cst_46 = arith.constant 5.000000e-01 : f32
    %167 = vector.broadcast %cst_46 : f32 to vector<8x128xf32>
    %168 = arith.addf %166, %167 : vector<8x128xf32>
    %169 = vector.extract_strided_slice %168 {offsets = [0, 0], sizes = [8, 32], strides = [1, 1]} : vector<8x128xf32> to vector<8x32xf32>
    %170 = vector.extract_strided_slice %168 {offsets = [0, 32], sizes = [8, 32], strides = [1, 1]} : vector<8x128xf32> to vector<8x32xf32>
    %171 = vector.extract_strided_slice %164 {offsets = [0, 64], sizes = [8, 32], strides = [1, 1]} : vector<8x128xf32> to vector<8x32xf32>
    %172 = vector.extract_strided_slice %168 {offsets = [0, 96], sizes = [8, 32], strides = [1, 1]} : vector<8x128xf32> to vector<8x32xf32>
    %173 = arith.mulf %170, %156 : vector<8x32xf32>
    %174 = arith.mulf %169, %171 : vector<8x32xf32>
    %175 = arith.addf %173, %174 : vector<8x32xf32>
    %176 = math.tanh %175 : vector<8x32xf32>
    %177 = arith.mulf %172, %176 : vector<8x32xf32>
    %c56 = arith.constant 56 : index
    %c0_47 = arith.constant 0 : index
    %178 = vector.load %arg12[%c56, %c0_47] : memref<64x32xf32, #tpu.memory_space<vmem>>, vector<8x32xf32>
    tpu.vector_store %arg12[%c56, %c0_47], %177 {strides = array<i32>} : memref<64x32xf32, #tpu.memory_space<vmem>>, vector<8x32xf32>,
    %c0_48 = arith.constant 0 : index
    %c0_49 = arith.constant 0 : index
    %179 = vector.load %arg12[%c0_48, %c0_49] : memref<64x32xf32, #tpu.memory_space<vmem>>, vector<64x32xf32>
    %180 = arith.truncf %179 : vector<64x32xf32> to vector<64x32xbf16>
    %cst_50 = arith.constant dense<0.000000e+00> : vector<64x8xf32>
    %181 = tpu.matmul %180, %24, %cst_50 {dimension_numbers = #tpu.dot_dimension_numbers<[1], [0], [0], [1], [0, 0, 1, 1], [], []>} : vector<64x32xbf16>, vector<32x8xbf16>, vector<64x8xf32> -> vector<64x8xf32>
    %c0_51 = arith.constant 0 : index
    %c0_52 = arith.constant 0 : index
    %182 = vector.load %arg6[%c0_51, %c0_52] : memref<1x8xf32, #tpu.memory_space<vmem>>, vector<1x8xf32>
    %183 = vector.broadcast %182 : vector<1x8xf32> to vector<64x8xf32>
    %184 = arith.addf %181, %183 : vector<64x8xf32>
    %c0_53 = arith.constant 0 : index
    %c0_54 = arith.constant 0 : index
    %185 = vector.load %arg9[%c0_53, %c0_54] : memref<64x8xf32, #tpu.memory_space<vmem>>, vector<64x8xf32>
    tpu.vector_store %arg9[%c0_53, %c0_54], %184 {strides = array<i32>} : memref<64x8xf32, #tpu.memory_space<vmem>>, vector<64x8xf32>,
    %c0_55 = arith.constant 0 : index
    %c0_56 = arith.constant 0 : index
    %186 = vector.load %arg10[%c0_55, %c0_56] : memref<8x32xf32, #tpu.memory_space<vmem>>, vector<8x32xf32>
    tpu.vector_store %arg10[%c0_55, %c0_56], %177 {strides = array<i32>} : memref<8x32xf32, #tpu.memory_space<vmem>>, vector<8x32xf32>,
    %c0_57 = arith.constant 0 : index
    %c0_58 = arith.constant 0 : index
    %187 = vector.load %arg11[%c0_57, %c0_58] : memref<8x32xf32, #tpu.memory_space<vmem>>, vector<8x32xf32>
    tpu.vector_store %arg11[%c0_57, %c0_58], %175 {strides = array<i32>} : memref<8x32xf32, #tpu.memory_space<vmem>>, vector<8x32xf32>,
    return
  }
  func.func @transform_0(%arg0: i32) -> (i32, i32) {
    %c0_i32 = arith.constant 0 : i32
    %c0_i32_0 = arith.constant 0 : i32
    %c0_i32_1 = arith.constant 0 : i32
    return %c0_i32, %c0_i32_0 : i32, i32
  }
  func.func @transform_1(%arg0: i32) -> (i32, i32) {
    %c0_i32 = arith.constant 0 : i32
    %c0_i32_0 = arith.constant 0 : i32
    %c0_i32_1 = arith.constant 0 : i32
    return %c0_i32, %c0_i32_0 : i32, i32
  }
  func.func @transform_2(%arg0: i32) -> (i32, i32) {
    %c0_i32 = arith.constant 0 : i32
    %c0_i32_0 = arith.constant 0 : i32
    %c0_i32_1 = arith.constant 0 : i32
    return %c0_i32, %c0_i32_0 : i32, i32
  }
  func.func @transform_3(%arg0: i32) -> (i32, i32) {
    %c0_i32 = arith.constant 0 : i32
    %c0_i32_0 = arith.constant 0 : i32
    %c0_i32_1 = arith.constant 0 : i32
    return %c0_i32, %c0_i32_0 : i32, i32
  }
  func.func @transform_4(%arg0: i32) -> (i32, i32) {
    %c0_i32 = arith.constant 0 : i32
    %c0_i32_0 = arith.constant 0 : i32
    %c0_i32_1 = arith.constant 0 : i32
    return %c0_i32, %c0_i32_0 : i32, i32
  }
  func.func @transform_5(%arg0: i32) -> (i32, i32) {
    %c0_i32 = arith.constant 0 : i32
    %c0_i32_0 = arith.constant 0 : i32
    %c0_i32_1 = arith.constant 0 : i32
    return %c0_i32, %c0_i32_0 : i32, i32
  }
  func.func @transform_6(%arg0: i32) -> (i32, i32) {
    %c0_i32 = arith.constant 0 : i32
    %c0_i32_0 = arith.constant 0 : i32
    %c0_i32_1 = arith.constant 0 : i32
    return %c0_i32, %c0_i32_0 : i32, i32
  }
  func.func @transform_7(%arg0: i32) -> (i32, i32) {
    %c0_i32 = arith.constant 0 : i32
    %c0_i32_0 = arith.constant 0 : i32
    %c0_i32_1 = arith.constant 0 : i32
    return %c0_i32, %c0_i32_0 : i32, i32
  }
  func.func @transform_8(%arg0: i32) -> (i32, i32) {
    %c0_i32 = arith.constant 0 : i32
    %c0_i32_0 = arith.constant 0 : i32
    %c0_i32_1 = arith.constant 0 : i32
    return %c0_i32, %c0_i32_0 : i32, i32
  }
  func.func @transform_9(%arg0: i32) -> (i32, i32) {
    %c0_i32 = arith.constant 0 : i32
    %c0_i32_0 = arith.constant 0 : i32
    %c0_i32_1 = arith.constant 0 : i32
    return %c0_i32, %c0_i32_0 : i32, i32
  }
  func.func @transform_10(%arg0: i32) -> (i32, i32) {
    %c0_i32 = arith.constant 0 : i32
    %c0_i32_0 = arith.constant 0 : i32
    %c0_i32_1 = arith.constant 0 : i32
    return %c0_i32, %c0_i32_0 : i32, i32
  }
}

</mosaic_0001>

<llo_original>
// kernel: tpu_custom_call.1
$region0: #{tpu_custom_call.1}
  #allocation0 [shape = 'u32[]', space=smem, size = 0x4, offset = 0x4, fixed_abs, tag = 'smem constant byte address 0x4 - core index']
  #allocation1 [shape = 'u32[72,128]{1,0:T(1,128)}', space=vmem, size = 0x9000, scoped, tag = 'internal scratch']
  #allocation2 [shape = 'f32[64,32]{1,0:T(8,128)}', space=vmem, size = 0x8000, scoped, tag = 'scratch operand']
  %s0 = inlined_call_operand.vmem [shape: f32[64,16], index: 0, kind: input, shape index: {}]
  %s1 = inlined_call_operand.vmem [shape: f32[16,128], index: 1, kind: input, shape index: {}]
  %s2 = inlined_call_operand.vmem [shape: f32[32,128], index: 2, kind: input, shape index: {}]
  %s3 = inlined_call_operand.vmem [shape: f32[1,128], index: 3, kind: input, shape index: {}]
  %s4 = inlined_call_operand.vmem [shape: f32[32,8], index: 4, kind: input, shape index: {}]
  %s5 = inlined_call_operand.vmem [shape: f32[1,8], index: 5, kind: input, shape index: {}]
  %s6 = inlined_call_operand.vmem [shape: f32[8,32], index: 6, kind: input, shape index: {}]
  %s7 = inlined_call_operand.vmem [shape: f32[8,32], index: 7, kind: input, shape index: {}]
  %s8 = inlined_call_operand.vmem [shape: f32[64,8], index: 8, kind: output, shape index: {0}]
  %s9 = inlined_call_operand.hbm [shape: f32[8,32], index: 9, kind: output, shape index: {1}]
  %s10 = inlined_call_operand.hbm [shape: f32[8,32], index: 10, kind: output, shape index: {2}]
  %11 = xla_tuple %s8, %s9, %s10
  %s12 = sld [smem:[#allocation0]]
  $region58: #{tpu_custom_call.1} parent=0
    _
  %s14 = ssub.s32 1, %s12
  %s15 = scalar_select 0, %s14, %s12
  $region1: #{tpu_custom_call.1} parent=0
    #allocation3 [shape = 'u8[4096]{0}', space=vmem, size = 0x1000, scoped, tag = 'output window, operand 1, single buffered']
    #allocation4 [shape = 's32[1]{0}', space=sflag, size = 0x4, scoped, tag = 'scoped memory for tpu_custom_call.1']
    #allocation5 [shape = 'u8[4096]{0}', space=vmem, size = 0x1000, scoped, tag = 'output window, operand 2, single buffered']
    #allocation6 [shape = 's32[1]{0}', space=sflag, size = 0x4, scoped, tag = 'scoped memory for tpu_custom_call.1']
    %16 = vsyncpa [#allocation4], 0
    %17 = vsyncpa [#allocation6], 0
    // Predicated region
    $region2: #{tpu_custom_call.1} parent=1 // pred_check
      _
    $region3: #{tpu_custom_call.1} parent=1 // pred_check_branch
      %19 = sbr.rel (0) target = $region5
    $region4: #{tpu_custom_call.1} parent=1 // pred_region
      _
    $region5: #{tpu_custom_call.1} parent=1 // pred_fallthru
      _
    // Predicated region
    $region6: #{tpu_custom_call.1} parent=1 // pred_check
      _
    $region7: #{tpu_custom_call.1} parent=1 // pred_check_branch
      %21 = sbr.rel (0) target = $region9
    $region8: #{tpu_custom_call.1} parent=1 // pred_region
      _
    $region9: #{tpu_custom_call.1} parent=1 // pred_fallthru
      _
    // Predicated region
    $region10: #{tpu_custom_call.1} parent=1 // pred_check
      _
    $region11: #{tpu_custom_call.1} parent=1 // pred_check_branch
      %23 = sbr.rel (0) target = $region13
    $region12: #{tpu_custom_call.1} parent=1 // pred_region
      _
    $region13: #{tpu_custom_call.1} parent=1 // pred_fallthru
      _
    // Predicated region
    $region14: #{tpu_custom_call.1} parent=1 // pred_check
      _
    $region15: #{tpu_custom_call.1} parent=1 // pred_check_branch
      %25 = sbr.rel (0) target = $region17
    $region16: #{tpu_custom_call.1} parent=1 // pred_region
      _
    $region17: #{tpu_custom_call.1} parent=1 // pred_fallthru
      _
    // Predicated region
    $region18: #{tpu_custom_call.1} parent=1 // pred_check
      _
    $region19: #{tpu_custom_call.1} parent=1 // pred_check_branch
      %27 = sbr.rel (0) target = $region21
    $region20: #{tpu_custom_call.1} parent=1 // pred_region
      _
    $region21: #{tpu_custom_call.1} parent=1 // pred_fallthru
      _
    // Predicated region
    $region22: #{tpu_custom_call.1} parent=1 // pred_check
      _
    $region23: #{tpu_custom_call.1} parent=1 // pred_check_branch
      %29 = sbr.rel (0) target = $region25
    $region24: #{tpu_custom_call.1} parent=1 // pred_region
      _
    $region25: #{tpu_custom_call.1} parent=1 // pred_fallthru
      _
    // Predicated region
    $region26: #{tpu_custom_call.1} parent=1 // pred_check
      _
    $region27: #{tpu_custom_call.1} parent=1 // pred_check_branch
      %31 = sbr.rel (0) target = $region29
    $region28: #{tpu_custom_call.1} parent=1 // pred_region
      _
    $region29: #{tpu_custom_call.1} parent=1 // pred_fallthru
      _
    // Predicated region
    $region30: #{tpu_custom_call.1} parent=1 // pred_check
      _
    $region31: #{tpu_custom_call.1} parent=1 // pred_check_branch
      %33 = sbr.rel (0) target = $region33
    $region32: #{tpu_custom_call.1} parent=1 // pred_region
      _
    $region33: #{tpu_custom_call.1} parent=1 // pred_fallthru
      _
    %v35 = vlaneseq
    %v36 = vand.u32 %v35, 127
    %vm37 = vcmp.ge.s32.totalorder %v36, 64
    %vm38 = vcmp.lt.s32.totalorder %v36, 96
    %vm39 = vmand %vm37, %vm38
    %v40 = vsel %vm39, 1.0, 0.5
    %v41 = vld [vmem:[%s0] sm:$0xff]
    %v42 = vld [vmem:[%s0 + $0x8] sm:$0xff]
    %v43 = vld [vmem:[%s0 + $0x10] sm:$0xff]
    %v44 = vld [vmem:[%s0 + $0x18] sm:$0xff]
    %v45 = vld [vmem:[%s0 + $0x20] sm:$0xff]
    %v46 = vld [vmem:[%s0 + $0x28] sm:$0xff]
    %v47 = vld [vmem:[%s0 + $0x30] sm:$0xff]
    %v48 = vld [vmem:[%s0 + $0x38] sm:$0xff]
    %v49 = vpack.c.bf16 %v42, %v41
    %v50 = vpack.c.bf16 %v44, %v43
    %v51 = vpack.c.bf16 %v46, %v45
    %v52 = vpack.c.bf16 %v48, %v47
    %v53 = vld [vmem:[%s1] sm:$0xff]
    %v54 = vld [vmem:[%s1 + $0x8] sm:$0xff]
    %v55 = vpack.c.bf16 %v54, %v53
    %v56 = vld [vmem:[%s3] sm:$0x1]
    %v58 = vperm.slane %v56, 0
    %vm60 = vcmask 130048
    %v62 = vsel %vm60, %v49, 0
    %v65 = vsel %vm60, %v50, 0
    %v68 = vsel %vm60, %v51, 0
    %v71 = vsel %vm60, %v52, 0
    %73 = vmatpush.bf16.msra.mxu0 0
    %74 = vmatpush.bf16.msra.mxu0 0
    %75 = vmatpush.bf16.msra.mxu0 0
    %76 = vmatpush.bf16.msra.mxu0 0
    %77 = vmatpush.bf16.msra.mxu0 0
    %78 = vmatpush.bf16.msra.mxu0 0
    %79 = vmatpush.bf16.msra.mxu0 0
    %80 = vmatpush.bf16.msra.mxu0 %v55
    %81 = vmatmul.bf16.gmra.mxu0 %v62
    %v82 = vpop.f32.mrf.mxu0
    %v83 = vadd.f32 %v58, %v82
    %v84 = vpop.f32.mrf.mxu0
    %v85 = vadd.f32 %v58, %v84
    %86 = vmatmul.bf16.gmra.mxu0 %v65
    %v87 = vpop.f32.mrf.mxu0
    %v88 = vadd.f32 %v58, %v87
    %v89 = vpop.f32.mrf.mxu0
    %v90 = vadd.f32 %v58, %v89
    %91 = vmatmul.bf16.gmra.mxu0 %v68
    %v92 = vpop.f32.mrf.mxu0
    %v93 = vadd.f32 %v58, %v92
    %v94 = vpop.f32.mrf.mxu0
    %v95 = vadd.f32 %v58, %v94
    %96 = vmatmul.bf16.gmra.mxu0 %v71
    %v97 = vpop.f32.mrf.mxu0
    %v98 = vadd.f32 %v58, %v97
    %v99 = vpop.f32.mrf.mxu0
    %v100 = vadd.f32 %v58, %v99
    %101 = vdwg.mxu0
    %v102 = vmul.f32 %v83, %v40
    %v103 = vmul.f32 %v85, %v40
    %v104 = vmul.f32 %v88, %v40
    %v105 = vmul.f32 %v90, %v40
    %v106 = vmul.f32 %v93, %v40
    %v107 = vmul.f32 %v95, %v40
    %v108 = vmul.f32 %v98, %v40
    %v109 = vmul.f32 %v100, %v40
    %v110 = vld [vmem:[%s2] sm:$0xff]
    %v111 = vld [vmem:[%s2 + $0x8] sm:$0xff]
    %v112 = vld [vmem:[%s2 + $0x10] sm:$0xff]
    %v113 = vld [vmem:[%s2 + $0x18] sm:$0xff]
    %v114 = vmul.f32 %v110, %v40
    %v115 = vmul.f32 %v111, %v40
    %v116 = vmul.f32 %v112, %v40
    %v117 = vmul.f32 %v113, %v40
    %v118 = vpack.c.bf16 %v115, %v114
    %v119 = vpack.c.bf16 %v117, %v116
    %v120 = vld [vmem:[%s4] sm:$0xff]
    %v121 = vld [vmem:[%s4 + $0x8] sm:$0xff]
    %v122 = vld [vmem:[%s4 + $0x10] sm:$0xff]
    %v123 = vld [vmem:[%s4 + $0x18] sm:$0xff]
    %v124 = vpack.c.bf16 %v121, %v120
    %v125 = vpack.c.bf16 %v123, %v122
    %v126 = vld [vmem:[%s6] sm:$0xff]
    %v127 = vld [vmem:[%s7] sm:$0xff]
    %v128 = vpack.c.bf16 %v126, %v126
    %vm129 = vcmask 261120
    %v131 = vsel %vm129, %v128, 0
    %133 = vmatpush.bf16.msra.mxu0 0
    %134 = vmatpush.bf16.msra.mxu0 0
    %135 = vmatpush.bf16.msra.mxu0 0
    %136 = vmatpush.bf16.msra.mxu0 0
    %137 = vmatpush.bf16.msra.mxu0 0
    %138 = vmatpush.bf16.msra.mxu0 0
    %139 = vmatpush.bf16.msra.mxu0 %v119
    %140 = vmatpush.bf16.msra.mxu0 %v118
    %141 = vmatmul.bf16.gmra.mxu0 %v131
    %v142 = vpop.f32.mrf.mxu0
    %v143 = vadd.f32 0.0, %v142
    %v144 = vpop.f32.mrf.mxu0
    %145 = vdwg.mxu0
    %v146 = vadd.f32 %v102, %v143
    %v147 = vtanh.pop %v146
    %v148 = vmul.f32 %v147, 0.5
    %v149 = vadd.f32 %v148, 0.5
    %151 = vrot.lane.b32.xlu0 %v127, 32
    %v152 = vpop.permute.xlu0 %151
    %v154 = vmul.f32 %v149, %v152
    %156 = vrot.lane.b32.xlu0 %v147, 64
    %v157 = vpop.permute.xlu0 %156
    %v159 = vmul.f32 %v149, %v157
    %161 = vrot.lane.b32.xlu0 %v159, 32
    %v162 = vpop.permute.xlu0 %161
    %v164 = vadd.f32 %v154, %v162
    %v165 = vtanh.pop %v164
    %167 = vrot.lane.b32.xlu0 %v165, 64
    %v168 = vpop.permute.xlu0 %167
    %v170 = vmul.f32 %v149, %v168
    %172 = vrot.lane.b32.xlu0 %v170, 32
    %v173 = vpop.permute.xlu0 %172
    %175 = vst.msk [vmem:[#allocation2] sm:$0xff] %vm129, %v173
    %v176 = vpack.c.bf16 %v170, %v170
    %178 = vrot.lane.b32.xlu0 %v176, 32
    %v179 = vpop.permute.xlu0 %178
    %v181 = vsel %vm129, %v179, 0
    %183 = vmatpush.bf16.msra.mxu0 0
    %184 = vmatpush.bf16.msra.mxu0 0
    %185 = vmatpush.bf16.msra.mxu0 0
    %186 = vmatpush.bf16.msra.mxu0 0
    %187 = vmatpush.bf16.msra.mxu0 0
    %188 = vmatpush.bf16.msra.mxu0 0
    %189 = vmatpush.bf16.msra.mxu0 %v119
    %190 = vmatpush.bf16.msra.mxu0 %v118
    %191 = vmatmul.bf16.gmra.mxu0 %v181
    %v192 = vpop.f32.mrf.mxu0
    %v193 = vadd.f32 0.0, %v192
    %v194 = vpop.f32.mrf.mxu0
    %195 = vdwg.mxu0
    %v196 = vadd.f32 %v103, %v193
    %v197 = vtanh.pop %v196
    %v198 = vmul.f32 %v197, 0.5
    %v199 = vadd.f32 %v198, 0.5
    %v200 = vmul.f32 %v199, %v164
    %202 = vrot.lane.b32.xlu0 %v197, 64
    %v203 = vpop.permute.xlu0 %202
    %v205 = vmul.f32 %v199, %v203
    %207 = vrot.lane.b32.xlu0 %v205, 32
    %v208 = vpop.permute.xlu0 %207
    %v210 = vadd.f32 %v200, %v208
    %v211 = vtanh.pop %v210
    %213 = vrot.lane.b32.xlu0 %v211, 64
    %v214 = vpop.permute.xlu0 %213
    %v216 = vmul.f32 %v199, %v214
    %218 = vrot.lane.b32.xlu0 %v216, 32
    %v219 = vpop.permute.xlu0 %218
    %221 = vst.msk [vmem:[#allocation2 + $0x8] sm:$0xff] %vm129, %v219
    %v222 = vpack.c.bf16 %v216, %v216
    %224 = vrot.lane.b32.xlu0 %v222, 32
    %v225 = vpop.permute.xlu0 %224
    %v227 = vsel %vm129, %v225, 0
    %229 = vmatpush.bf16.msra.mxu0 0
    %230 = vmatpush.bf16.msra.mxu0 0
    %231 = vmatpush.bf16.msra.mxu0 0
    %232 = vmatpush.bf16.msra.mxu0 0
    %233 = vmatpush.bf16.msra.mxu0 0
    %234 = vmatpush.bf16.msra.mxu0 0
    %235 = vmatpush.bf16.msra.mxu0 %v119
    %236 = vmatpush.bf16.msra.mxu0 %v118
    %237 = vmatmul.bf16.gmra.mxu0 %v227
    %v238 = vpop.f32.mrf.mxu0
    %v239 = vadd.f32 0.0, %v238
    %v240 = vpop.f32.mrf.mxu0
    %241 = vdwg.mxu0
    %v242 = vadd.f32 %v104, %v239
    %v243 = vtanh.pop %v242
    %v244 = vmul.f32 %v243, 0.5
    %v245 = vadd.f32 %v244, 0.5
    %v246 = vmul.f32 %v245, %v210
    %248 = vrot.lane.b32.xlu0 %v243, 64
    %v249 = vpop.permute.xlu0 %248
    %v251 = vmul.f32 %v245, %v249
    %253 = vrot.lane.b32.xlu0 %v251, 32
    %v254 = vpop.permute.xlu0 %253
    %v256 = vadd.f32 %v246, %v254
    %v257 = vtanh.pop %v256
    %259 = vrot.lane.b32.xlu0 %v257, 64
    %v260 = vpop.permute.xlu0 %259
    %v262 = vmul.f32 %v245, %v260
    %264 = vrot.lane.b32.xlu0 %v262, 32
    %v265 = vpop.permute.xlu0 %264
    %267 = vst.msk [vmem:[#allocation2 + $0x10] sm:$0xff] %vm129, %v265
    %v268 = vpack.c.bf16 %v262, %v262
    %270 = vrot.lane.b32.xlu0 %v268, 32
    %v271 = vpop.permute.xlu0 %270
    %v273 = vsel %vm129, %v271, 0
    %275 = vmatpush.bf16.msra.mxu0 0
    %276 = vmatpush.bf16.msra.mxu0 0
    %277 = vmatpush.bf16.msra.mxu0 0
    %278 = vmatpush.bf16.msra.mxu0 0
    %279 = vmatpush.bf16.msra.mxu0 0
    %280 = vmatpush.bf16.msra.mxu0 0
    %281 = vmatpush.bf16.msra.mxu0 %v119
    %282 = vmatpush.bf16.msra.mxu0 %v118
    %283 = vmatmul.bf16.gmra.mxu0 %v273
    %v284 = vpop.f32.mrf.mxu0
    %v285 = vadd.f32 0.0, %v284
    %v286 = vpop.f32.mrf.mxu0
    %287 = vdwg.mxu0
    %v288 = vadd.f32 %v105, %v285
    %v289 = vtanh.pop %v288
    %v290 = vmul.f32 %v289, 0.5
    %v291 = vadd.f32 %v290, 0.5
    %v292 = vmul.f32 %v291, %v256
    %294 = vrot.lane.b32.xlu0 %v289, 64
    %v295 = vpop.permute.xlu0 %294
    %v297 = vmul.f32 %v291, %v295
    %299 = vrot.lane.b32.xlu0 %v297, 32
    %v300 = vpop.permute.xlu0 %299
    %v302 = vadd.f32 %v292, %v300
    %v303 = vtanh.pop %v302
    %305 = vrot.lane.b32.xlu0 %v303, 64
    %v306 = vpop.permute.xlu0 %305
    %v308 = vmul.f32 %v291, %v306
    %310 = vrot.lane.b32.xlu0 %v308, 32
    %v311 = vpop.permute.xlu0 %310
    %313 = vst.msk [vmem:[#allocation2 + $0x18] sm:$0xff] %vm129, %v311
    %v314 = vpack.c.bf16 %v308, %v308
    %316 = vrot.lane.b32.xlu0 %v314, 32
    %v317 = vpop.permute.xlu0 %316
    %v319 = vsel %vm129, %v317, 0
    %321 = vmatpush.bf16.msra.mxu0 0
    %322 = vmatpush.bf16.msra.mxu0 0
    %323 = vmatpush.bf16.msra.mxu0 0
    %324 = vmatpush.bf16.msra.mxu0 0
    %325 = vmatpush.bf16.msra.mxu0 0
    %326 = vmatpush.bf16.msra.mxu0 0
    %327 = vmatpush.bf16.msra.mxu0 %v119
    %328 = vmatpush.bf16.msra.mxu0 %v118
    %329 = vmatmul.bf16.gmra.mxu0 %v319
    %v330 = vpop.f32.mrf.mxu0
    %v331 = vadd.f32 0.0, %v330
    %v332 = vpop.f32.mrf.mxu0
    %333 = vdwg.mxu0
    %v334 = vadd.f32 %v106, %v331
    %v335 = vtanh.pop %v334
    %v336 = vmul.f32 %v335, 0.5
    %v337 = vadd.f32 %v336, 0.5
    %v338 = vmul.f32 %v337, %v302
    %340 = vrot.lane.b32.xlu0 %v335, 64
    %v341 = vpop.permute.xlu0 %340
    %v343 = vmul.f32 %v337, %v341
    %345 = vrot.lane.b32.xlu0 %v343, 32
    %v346 = vpop.permute.xlu0 %345
    %v348 = vadd.f32 %v338, %v346
    %v349 = vtanh.pop %v348
    %351 = vrot.lane.b32.xlu0 %v349, 64
    %v352 = vpop.permute.xlu0 %351
    %v354 = vmul.f32 %v337, %v352
    %356 = vrot.lane.b32.xlu0 %v354, 32
    %v357 = vpop.permute.xlu0 %356
    %359 = vst.msk [vmem:[#allocation2 + $0x20] sm:$0xff] %vm129, %v357
    %v360 = vpack.c.bf16 %v354, %v354
    %362 = vrot.lane.b32.xlu0 %v360, 32
    %v363 = vpop.permute.xlu0 %362
    %v365 = vsel %vm129, %v363, 0
    %367 = vmatpush.bf16.msra.mxu0 0
    %368 = vmatpush.bf16.msra.mxu0 0
    %369 = vmatpush.bf16.msra.mxu0 0
    %370 = vmatpush.bf16.msra.mxu0 0
    %371 = vmatpush.bf16.msra.mxu0 0
    %372 = vmatpush.bf16.msra.mxu0 0
    %373 = vmatpush.bf16.msra.mxu0 %v119
    %374 = vmatpush.bf16.msra.mxu0 %v118
    %375 = vmatmul.bf16.gmra.mxu0 %v365
    %v376 = vpop.f32.mrf.mxu0
    %v377 = vadd.f32 0.0, %v376
    %v378 = vpop.f32.mrf.mxu0
    %379 = vdwg.mxu0
    %v380 = vadd.f32 %v107, %v377
    %v381 = vtanh.pop %v380
    %v382 = vmul.f32 %v381, 0.5
    %v383 = vadd.f32 %v382, 0.5
    %v384 = vmul.f32 %v383, %v348
    %386 = vrot.lane.b32.xlu0 %v381, 64
    %v387 = vpop.permute.xlu0 %386
    %v389 = vmul.f32 %v383, %v387
    %391 = vrot.lane.b32.xlu0 %v389, 32
    %v392 = vpop.permute.xlu0 %391
    %v394 = vadd.f32 %v384, %v392
    %v395 = vtanh.pop %v394
    %397 = vrot.lane.b32.xlu0 %v395, 64
    %v398 = vpop.permute.xlu0 %397
    %v400 = vmul.f32 %v383, %v398
    %402 = vrot.lane.b32.xlu0 %v400, 32
    %v403 = vpop.permute.xlu0 %402
    %405 = vst.msk [vmem:[#allocation2 + $0x28] sm:$0xff] %vm129, %v403
    %v406 = vpack.c.bf16 %v400, %v400
    %408 = vrot.lane.b32.xlu0 %v406, 32
    %v409 = vpop.permute.xlu0 %408
    %v411 = vsel %vm129, %v409, 0
    %413 = vmatpush.bf16.msra.mxu0 0
    %414 = vmatpush.bf16.msra.mxu0 0
    %415 = vmatpush.bf16.msra.mxu0 0
    %416 = vmatpush.bf16.msra.mxu0 0
    %417 = vmatpush.bf16.msra.mxu0 0
    %418 = vmatpush.bf16.msra.mxu0 0
    %419 = vmatpush.bf16.msra.mxu0 %v119
    %420 = vmatpush.bf16.msra.mxu0 %v118
    %421 = vmatmul.bf16.gmra.mxu0 %v411
    %v422 = vpop.f32.mrf.mxu0
    %v423 = vadd.f32 0.0, %v422
    %v424 = vpop.f32.mrf.mxu0
    %425 = vdwg.mxu0
    %v426 = vadd.f32 %v108, %v423
    %v427 = vtanh.pop %v426
    %v428 = vmul.f32 %v427, 0.5
    %v429 = vadd.f32 %v428, 0.5
    %v430 = vmul.f32 %v429, %v394
    %432 = vrot.lane.b32.xlu0 %v427, 64
    %v433 = vpop.permute.xlu0 %432
    %v435 = vmul.f32 %v429, %v433
    %437 = vrot.lane.b32.xlu0 %v435, 32
    %v438 = vpop.permute.xlu0 %437
    %v440 = vadd.f32 %v430, %v438
    %v441 = vtanh.pop %v440
    %443 = vrot.lane.b32.xlu0 %v441, 64
    %v444 = vpop.permute.xlu0 %443
    %v446 = vmul.f32 %v429, %v444
    %448 = vrot.lane.b32.xlu0 %v446, 32
    %v449 = vpop.permute.xlu0 %448
    %451 = vst.msk [vmem:[#allocation2 + $0x30] sm:$0xff] %vm129, %v449
    %v452 = vpack.c.bf16 %v446, %v446
    %454 = vrot.lane.b32.xlu0 %v452, 32
    %v455 = vpop.permute.xlu0 %454
    %v457 = vsel %vm129, %v455, 0
    %459 = vmatpush.bf16.msra.mxu0 0
    %460 = vmatpush.bf16.msra.mxu0 0
    %461 = vmatpush.bf16.msra.mxu0 0
    %462 = vmatpush.bf16.msra.mxu0 0
    %463 = vmatpush.bf16.msra.mxu0 0
    %464 = vmatpush.bf16.msra.mxu0 0
    %465 = vmatpush.bf16.msra.mxu0 %v119
    %466 = vmatpush.bf16.msra.mxu0 %v118
    %467 = vmatmul.bf16.gmra.mxu0 %v457
    %v468 = vpop.f32.mrf.mxu0
    %v469 = vadd.f32 0.0, %v468
    %v470 = vpop.f32.mrf.mxu0
    %471 = vdwg.mxu0
    %v472 = vadd.f32 %v109, %v469
    %v473 = vtanh.pop %v472
    %v474 = vmul.f32 %v473, 0.5
    %v475 = vadd.f32 %v474, 0.5
    %v476 = vmul.f32 %v475, %v440
    %478 = vrot.lane.b32.xlu0 %v473, 64
    %v479 = vpop.permute.xlu0 %478
    %v481 = vmul.f32 %v475, %v479
    %483 = vrot.lane.b32.xlu0 %v481, 32
    %v484 = vpop.permute.xlu0 %483
    %v486 = vadd.f32 %v476, %v484
    %v487 = vtanh.pop %v486
    %489 = vrot.lane.b32.xlu0 %v487, 64
    %v490 = vpop.permute.xlu0 %489
    %v492 = vmul.f32 %v475, %v490
    %494 = vrot.lane.b32.xlu0 %v492, 32
    %v495 = vpop.permute.xlu0 %494
    %497 = vst.msk [vmem:[#allocation2 + $0x38] sm:$0xff] %vm129, %v495
    %v498 = vld [vmem:[#allocation2] sm:$0xff]
    %v499 = vld [vmem:[#allocation2 + $0x8] sm:$0xff]
    %v500 = vld [vmem:[#allocation2 + $0x10] sm:$0xff]
    %v501 = vld [vmem:[#allocation2 + $0x18] sm:$0xff]
    %v502 = vld [vmem:[#allocation2 + $0x20] sm:$0xff]
    %v503 = vld [vmem:[#allocation2 + $0x28] sm:$0xff]
    %v504 = vld [vmem:[#allocation2 + $0x30] sm:$0xff]
    %v505 = vld [vmem:[#allocation2 + $0x38] sm:$0xff]
    %v506 = vpack.c.bf16 %v499, %v498
    %v507 = vpack.c.bf16 %v501, %v500
    %v508 = vpack.c.bf16 %v503, %v502
    %v509 = vpack.c.bf16 %v505, %v504
    %v510 = vld [vmem:[%s5] sm:$0x1]
    %v512 = vperm.slane %v510, 0
    %v515 = vsel %vm129, %v506, 0
    %v518 = vsel %vm129, %v507, 0
    %v521 = vsel %vm129, %v508, 0
    %v524 = vsel %vm129, %v509, 0
    %526 = vmatpush.bf16.msra.mxu0 0
    %527 = vmatpush.bf16.msra.mxu0 0
    %528 = vmatpush.bf16.msra.mxu0 0
    %529 = vmatpush.bf16.msra.mxu0 0
    %530 = vmatpush.bf16.msra.mxu0 0
    %531 = vmatpush.bf16.msra.mxu0 0
    %532 = vmatpush.bf16.msra.mxu0 %v125
    %533 = vmatpush.bf16.msra.mxu0 %v124
    %534 = vmatmul.bf16.gmra.mxu0 %v515
    %v535 = vpop.f32.mrf.mxu0
    %v536 = vadd.f32 %v512, %v535
    %v537 = vpop.f32.mrf.mxu0
    %v538 = vadd.f32 %v512, %v537
    %539 = vmatmul.bf16.gmra.mxu0 %v518
    %v540 = vpop.f32.mrf.mxu0
    %v541 = vadd.f32 %v512, %v540
    %v542 = vpop.f32.mrf.mxu0
    %v543 = vadd.f32 %v512, %v542
    %544 = vmatmul.bf16.gmra.mxu0 %v521
    %v545 = vpop.f32.mrf.mxu0
    %v546 = vadd.f32 %v512, %v545
    %v547 = vpop.f32.mrf.mxu0
    %v548 = vadd.f32 %v512, %v547
    %549 = vmatmul.bf16.gmra.mxu0 %v524
    %v550 = vpop.f32.mrf.mxu0
    %v551 = vadd.f32 %v512, %v550
    %v552 = vpop.f32.mrf.mxu0
    %v553 = vadd.f32 %v512, %v552
    %554 = vdwg.mxu0
    %vm555 = vcmask 64512
    %556 = vst.msk [vmem:[%s8] sm:$0xff] %vm555, %v536
    %557 = vst.msk [vmem:[%s8 + $0x8] sm:$0xff] %vm555, %v538
    %558 = vst.msk [vmem:[%s8 + $0x10] sm:$0xff] %vm555, %v541
    %559 = vst.msk [vmem:[%s8 + $0x18] sm:$0xff] %vm555, %v543
    %560 = vst.msk [vmem:[%s8 + $0x20] sm:$0xff] %vm555, %v546
    %561 = vst.msk [vmem:[%s8 + $0x28] sm:$0xff] %vm555, %v548
    %562 = vst.msk [vmem:[%s8 + $0x30] sm:$0xff] %vm555, %v551
    %563 = vst.msk [vmem:[%s8 + $0x38] sm:$0xff] %vm555, %v553
    %564 = vst.msk [vmem:[#allocation3] sm:$0xff] %vm129, %v495
    %566 = vrot.lane.b32.xlu0 %v486, 96
    %v567 = vpop.permute.xlu0 %566
    %569 = vst.msk [vmem:[#allocation5] sm:$0xff] %vm129, %v567
    // Predicated region
    $region34: #{tpu_custom_call.1} parent=1 // pred_check
      _
    $region35: #{tpu_custom_call.1} parent=1 // pred_check_branch
      %571 = sbr.rel (0) target = $region37
    $region36: #{tpu_custom_call.1} parent=1 // pred_region
      _
    $region37: #{tpu_custom_call.1} parent=1 // pred_fallthru
      _
    // Predicated region
    $region38: #{tpu_custom_call.1} parent=1 // pred_check
      _
    $region39: #{tpu_custom_call.1} parent=1 // pred_check_branch
      %573 = sbr.rel (0) target = $region41
    $region40: #{tpu_custom_call.1} parent=1 // pred_region
      %575 = vsyncadd [#allocation4], 0
      %s577 = sshll.u32 [#allocation3], 4
      %s578 = int_to_ptr.vmem [resolvable:$true] %s577
      %s579 = sshll.u32 %s9, 4
      %s580 = int_to_ptr.hbm [resolvable:$true] %s579
      %582 = dma.vmem_to_hbm [thread:$0]  %s578, 128, %s580, [#allocation4]
    $region41: #{tpu_custom_call.1} parent=1 // pred_fallthru
      _
    // Predicated region
    $region42: #{tpu_custom_call.1} parent=1 // pred_check
      _
    $region43: #{tpu_custom_call.1} parent=1 // pred_check_branch
      %584 = sbr.rel (0) target = $region45
    $region44: #{tpu_custom_call.1} parent=1 // pred_region
      %586 = vsyncadd [#allocation6], 0
      %s588 = sshll.u32 [#allocation5], 4
      %s589 = int_to_ptr.vmem [resolvable:$true] %s588
      %s590 = sshll.u32 %s10, 4
      %s591 = int_to_ptr.hbm [resolvable:$true] %s590
      %593 = dma.vmem_to_hbm [thread:$0]  %s589, 128, %s591, [#allocation6]
    $region45: #{tpu_custom_call.1} parent=1 // pred_fallthru
      _
    // Predicated region
    $region46: #{tpu_custom_call.1} parent=1 // pred_check
      _
    $region47: #{tpu_custom_call.1} parent=1 // pred_check_branch
      %595 = sbr.rel (0) target = $region49
    $region48: #{tpu_custom_call.1} parent=1 // pred_region
      _
    $region49: #{tpu_custom_call.1} parent=1 // pred_fallthru
      _
    // Predicated region
    $region50: #{tpu_custom_call.1} parent=1 // pred_check
      _
    $region51: #{tpu_custom_call.1} parent=1 // pred_check_branch
      %597 = sbr.rel (0) target = $region53
    $region52: #{tpu_custom_call.1} parent=1 // pred_region
      %599 = dma.done [#allocation4], 128
    $region53: #{tpu_custom_call.1} parent=1 // pred_fallthru
      _
    // Predicated region
    $region54: #{tpu_custom_call.1} parent=1 // pred_check
      _
    $region55: #{tpu_custom_call.1} parent=1 // pred_check_branch
      %601 = sbr.rel (0) target = $region57
    $region56: #{tpu_custom_call.1} parent=1 // pred_region
      %603 = dma.done [#allocation6], 128
    $region57: #{tpu_custom_call.1} parent=1 // pred_fallthru
      _
    %604 = vsyncpa [#allocation4], 1
    %605 = vsyncpa [#allocation6], 1

</llo_original>
